<compile_context>
chip_gen: v5e
topology: v5e:2x2
jax: 0.10.0
libtpu: 0.0.40
codegen_flags: <defaults>
</compile_context>

<pallas_src>
import jax
import jax.numpy as jnp
from jax import lax
from jax.experimental import pallas as pl
from jax.experimental.pallas import tpu as pltpu


def _round_up(x, m):
    return (x + m - 1) // m * m


def _split_to_bf16_terms(table_f, n_terms):
    """Split a float table into n_terms bf16 arrays whose sum reconstructs it.

    For one-hot selection, summing the per-term MXU results in f32 recovers the
    original values (to within ~2^-24 relative for f32 with 3 terms).
    """
    terms = []
    resid = table_f.astype(jnp.float32)
    for _ in range(n_terms):
        t = resid.astype(jnp.bfloat16)
        terms.append(t)
        resid = resid - t.astype(jnp.float32)
    return jnp.stack(terms)  # (n_terms, V, E_pad) bf16


def _gather_onehot_kernel(ids_ref, terms_ref, out_ref):
    """One token tile: out[t, :] = table[ids[t], :] via one-hot MXU matmuls.

    ids_ref   : VMEM int32 (tile, 1)         -- this tile's (clamped) ids
    terms_ref : VMEM bf16 (n_terms, V, E_pad) -- resident table terms (1 copy)
    out_ref   : VMEM (tile, E_pad)
    """
    tile = out_ref.shape[0]
    n_terms, vocab, _ = terms_ref.shape

    ids = ids_ref[...]                                          # (tile, 1)
    iota = lax.broadcasted_iota(jnp.int32, (tile, vocab), 1)    # (tile, V)
    one_hot = jnp.where(iota == ids, 1.0, 0.0).astype(jnp.bfloat16)

    acc = jnp.dot(one_hot, terms_ref[0], preferred_element_type=jnp.float32)
    for t in range(1, n_terms):                                 # static unroll
        acc = acc + jnp.dot(one_hot, terms_ref[t],
                            preferred_element_type=jnp.float32)
    out_ref[...] = acc.astype(out_ref.dtype)


def positional_embedding(position_ids, emb_table, *, tile=512):
    """Gather rows of emb_table [V, E] at position_ids [...]; returns [..., E]."""
    vocab, embed = emb_table.shape
    out_dtype = emb_table.dtype
    itemsize = jnp.dtype(out_dtype).itemsize

    # Clamp to valid rows.  (PyTorch nn.Embedding would raise on OOB ids; here
    # they are clamped instead of trapping.)
    flat_ids = jnp.clip(position_ids.reshape(-1).astype(jnp.int32), 0, vocab - 1)
    n_tokens = flat_ids.shape[0]

    # Lane-dense output: pad the embedding dim to a multiple of 128.
    e_pad = _round_up(embed, 128)
    table = emb_table
    if e_pad != embed:
        table = jnp.pad(table, ((0, 0), (0, e_pad - embed)))

    # bf16 term decomposition (1 term if already bf16, 3 terms otherwise -> exact).
    n_terms = 1 if jnp.dtype(out_dtype) == jnp.bfloat16 else 3
    terms = _split_to_bf16_terms(table, n_terms)       # (n_terms, V, E_pad) bf16

    # VMEM budget from the actual device (v7x: 64 MiB/TC, v5e/v6e: 128 MiB).
    try:
        vmem_cap = int(pltpu.get_tpu_info().vmem_capacity_bytes)
    except Exception:  # defensive default: the smallest current generation
        vmem_cap = 64 << 20
    budget = vmem_cap - (12 << 20)                     # compiler-scratch headroom

    resident_bytes = n_terms * vocab * e_pad * 2       # single-buffered bf16 terms
    if resident_bytes + (4 << 20) > budget:
        # TODO(synk): Pallas HBM DMA-gather kernel for tables that do not fit
        # in VMEM (matters on v7x's 64 MiB).  Plain XLA gather for now.
        safe_ids = jnp.clip(position_ids, 0, vocab - 1)
        return jnp.take(emb_table, safe_ids, axis=0)

    # Per-token VMEM working set (double-buffered out + ids tiles, one-hot and
    # f32 accumulator temporaries), used to clamp the token tile to the budget.
    per_token = (2 * e_pad * itemsize   # output tile, double-buffered
                 + 2 * 512              # ids tile (lane-padded int32), x2 bufs
                 + 6 * vocab            # one-hot tile temporaries
                 + 4 * e_pad)           # f32 accumulator
    max_tile = (budget - resident_bytes - (2 << 20)) // per_token

    # Token tile: multiple of 8 sublanes, large to amortize ~0.35us/step grid
    # overhead, clamped to the padded token count and the VMEM budget.
    tile = max(8, min(tile, _round_up(n_tokens, 8)))
    tile = _round_up(tile, 8)
    tile = max(8, min(tile, (max_tile // 8) * 8))

    n_pad = _round_up(n_tokens, tile)
    if n_pad != n_tokens:
        flat_ids = jnp.pad(flat_ids, (0, n_pad - n_tokens))
    ids2d = flat_ids.reshape(n_pad, 1)

    vmem_limit = int(min(max(resident_bytes + tile * per_token + (2 << 20),
                             32 << 20),
                         vmem_cap - (4 << 20)))

    out_flat = pl.pallas_call(
        _gather_onehot_kernel,
        out_shape=jax.ShapeDtypeStruct((n_pad, e_pad), out_dtype),
        grid=(n_pad // tile,),
        in_specs=[
            # Per-tile ids block in VMEM (feeds the vectorized one-hot build).
            pl.BlockSpec((tile, 1), lambda i: (i, 0)),
            # Full table terms, resident in VMEM as a single copy (no
            # per-step pipelining / double buffering).
            pl.BlockSpec(memory_space=pltpu.MemorySpace.VMEM),
        ],
        out_specs=pl.BlockSpec((tile, e_pad), lambda i: (i, 0)),
        compiler_params=pltpu.CompilerParams(
            dimension_semantics=("parallel",),   # independent tiles -> 2 TCs on v7x
            vmem_limit_bytes=vmem_limit,
        ),
    )(ids2d, terms)

    out = out_flat[:n_tokens, :embed]
    return out.reshape(position_ids.shape + (embed,))


def make_params(key, max_position_embeddings, embedding_size, dtype=jnp.float32):
    # nn.Embedding default init: N(0, 1)
    return jax.random.normal(
        key, (max_position_embeddings, embedding_size), dtype=dtype
    )


if __name__ == "__main__":
    # Small shapes consistent with the module: batch=2, seq=8, hidden=32
    max_position_embeddings = 16
    embedding_size = 32
    batch, seq = 2, 8

    key = jax.random.PRNGKey(0)
    k_emb, k_ids = jax.random.split(key)

    emb_table = make_params(k_emb, max_position_embeddings, embedding_size)
    position_ids = jax.random.randint(
        k_ids, (batch, seq), 0, max_position_embeddings, dtype=jnp.int32
    )

    out = positional_embedding(position_ids, emb_table)
    out = jax.block_until_ready(out)

    # Correctness check against plain JAX gather (reference semantics).
    ref = jnp.take(emb_table, position_ids, axis=0)
    assert out.shape == (batch, seq, embedding_size), out.shape
    assert jnp.allclose(out, ref), "mismatch vs reference gather"

    # Exercise the multi-tile path (grid > 1, resident table reused across steps).
    ids2 = (jnp.arange(batch * seq, dtype=jnp.int32)
            .reshape(batch, seq) % max_position_embeddings)
    out2 = jax.block_until_ready(positional_embedding(ids2, emb_table, tile=8))
    ref2 = jnp.take(emb_table, ids2, axis=0)
    assert jnp.allclose(out2, ref2), "mismatch (multi-tile path)"

    # Exercise the padded path (token count not a multiple of the tile).
    ids3 = jnp.array([[0, 3, 7, 11, 15]], dtype=jnp.int32)
    out3 = jax.block_until_ready(positional_embedding(ids3, emb_table))
    ref3 = jnp.take(emb_table, ids3, axis=0)
    assert out3.shape == (1, 5, embedding_size), out3.shape
    assert jnp.allclose(out3, ref3), "mismatch (padded path)"

    # Exercise the bf16 single-term path.
    emb_bf16 = emb_table.astype(jnp.bfloat16)
    out4 = jax.block_until_ready(positional_embedding(position_ids, emb_bf16))
    ref4 = jnp.take(emb_bf16, position_ids, axis=0)
    assert out4.dtype == jnp.bfloat16
    assert jnp.allclose(out4.astype(jnp.float32), ref4.astype(jnp.float32)), \
        "mismatch (bf16 path)"

    print("KERNEL_OK")
</pallas_src>

<mosaic_0001>
module attributes {stable_mosaic.version = 11 : i64} {
  func.func @_gather_onehot_kernel(%arg0: i32, %arg1: memref<16x1xi32, #tpu.memory_space<vmem>>, %arg2: memref<3x16x128xbf16, #tpu.memory_space<vmem>>, %arg3: memref<16x128xf32, #tpu.memory_space<vmem>>) attributes {dimension_semantics = [#tpu.dimension_semantics<parallel>], iteration_bounds = array<i64: 1>, scalar_prefetch = 0 : i64, scratch_operands = 0 : i64, tpu.core_type = #tpu.core_type<tc>, window_params = [{transform_indices = @transform_0, window_bounds = array<i64: 16, 1>}, {pipeline_mode = #tpu.pipeline_mode<synchronous>, transform_indices = @transform_1, window_bounds = array<i64: 3, 16, 128>}, {transform_indices = @transform_2, window_bounds = array<i64: 16, 128>}]} {
    %c0 = arith.constant 0 : index
    %c0_0 = arith.constant 0 : index
    %0 = vector.load %arg1[%c0, %c0_0] : memref<16x1xi32, #tpu.memory_space<vmem>>, vector<16x1xi32>
    %1 = tpu.iota {dimensions = array<i32: 1>} : vector<16x16xi32>
    %2 = vector.broadcast %0 : vector<16x1xi32> to vector<16x16xi32>
    %3 = arith.cmpi eq, %1, %2 : vector<16x16xi32>
    %cst = arith.constant 1.000000e+00 : f32
    %cst_1 = arith.constant 0.000000e+00 : f32
    %4 = vector.broadcast %cst : f32 to vector<16x16xf32>
    %5 = vector.broadcast %cst_1 : f32 to vector<16x16xf32>
    %6 = arith.select %3, %4, %5 : vector<16x16xi1>, vector<16x16xf32>
    %7 = arith.truncf %6 : vector<16x16xf32> to vector<16x16xbf16>
    %c0_2 = arith.constant 0 : index
    %c0_3 = arith.constant 0 : index
    %c0_4 = arith.constant 0 : index
    %8 = vector.load %arg2[%c0_2, %c0_3, %c0_4] : memref<3x16x128xbf16, #tpu.memory_space<vmem>>, vector<1x16x128xbf16>
    %9 = vector.shape_cast %8 : vector<1x16x128xbf16> to vector<16x128xbf16>
    %cst_5 = arith.constant dense<0.000000e+00> : vector<16x128xf32>
    %10 = tpu.matmul %7, %9, %cst_5 {dimension_numbers = #tpu.dot_dimension_numbers<[1], [0], [0], [1], [0, 0, 1, 1], [], []>} : vector<16x16xbf16>, vector<16x128xbf16>, vector<16x128xf32> -> vector<16x128xf32>
    %c1 = arith.constant 1 : index
    %c0_6 = arith.constant 0 : index
    %c0_7 = arith.constant 0 : index
    %11 = vector.load %arg2[%c1, %c0_6, %c0_7] : memref<3x16x128xbf16, #tpu.memory_space<vmem>>, vector<1x16x128xbf16>
    %12 = vector.shape_cast %11 : vector<1x16x128xbf16> to vector<16x128xbf16>
    %cst_8 = arith.constant dense<0.000000e+00> : vector<16x128xf32>
    %13 = tpu.matmul %7, %12, %cst_8 {dimension_numbers = #tpu.dot_dimension_numbers<[1], [0], [0], [1], [0, 0, 1, 1], [], []>} : vector<16x16xbf16>, vector<16x128xbf16>, vector<16x128xf32> -> vector<16x128xf32>
    %14 = arith.addf %10, %13 : vector<16x128xf32>
    %c2 = arith.constant 2 : index
    %c0_9 = arith.constant 0 : index
    %c0_10 = arith.constant 0 : index
    %15 = vector.load %arg2[%c2, %c0_9, %c0_10] : memref<3x16x128xbf16, #tpu.memory_space<vmem>>, vector<1x16x128xbf16>
    %16 = vector.shape_cast %15 : vector<1x16x128xbf16> to vector<16x128xbf16>
    %cst_11 = arith.constant dense<0.000000e+00> : vector<16x128xf32>
    %17 = tpu.matmul %7, %16, %cst_11 {dimension_numbers = #tpu.dot_dimension_numbers<[1], [0], [0], [1], [0, 0, 1, 1], [], []>} : vector<16x16xbf16>, vector<16x128xbf16>, vector<16x128xf32> -> vector<16x128xf32>
    %18 = arith.addf %14, %17 : vector<16x128xf32>
    %c0_12 = arith.constant 0 : index
    %c0_13 = arith.constant 0 : index
    %19 = vector.load %arg3[%c0_12, %c0_13] : memref<16x128xf32, #tpu.memory_space<vmem>>, vector<16x128xf32>
    tpu.vector_store %arg3[%c0_12, %c0_13], %18 {strides = array<i32>} : memref<16x128xf32, #tpu.memory_space<vmem>>, vector<16x128xf32>,
    return
  }
  func.func @transform_0(%arg0: i32) -> (i32, i32) {
    %c0_i32 = arith.constant 0 : i32
    %c0_i32_0 = arith.constant 0 : i32
    return %arg0, %c0_i32 : i32, i32
  }
  func.func @transform_1(%arg0: i32) -> (i32, i32, i32) {
    %c0_i32 = arith.constant 0 : i32
    %c0_i32_0 = arith.constant 0 : i32
    %c0_i32_1 = arith.constant 0 : i32
    %c0_i32_2 = arith.constant 0 : i32
    return %c0_i32, %c0_i32_0, %c0_i32_1 : i32, i32, i32
  }
  func.func @transform_2(%arg0: i32) -> (i32, i32) {
    %c0_i32 = arith.constant 0 : i32
    %c0_i32_0 = arith.constant 0 : i32
    return %arg0, %c0_i32 : i32, i32
  }
}

</mosaic_0001>

<llo_original>
// kernel: tpu_custom_call.1
$region0: #{tpu_custom_call.1}
  #allocation0 [shape = 'u32[]', space=smem, size = 0x4, offset = 0x4, fixed_abs, tag = 'smem constant byte address 0x4 - core index']
  #allocation1 [shape = 'u32[72,128]{1,0:T(1,128)}', space=vmem, size = 0x9000, scoped, tag = 'internal scratch']
  %s0 = inlined_call_operand.vmem [shape: s32[16,1], index: 0, kind: input, shape index: {}]
  %s1 = inlined_call_operand.hbm [shape: bf16[3,16,128], index: 1, kind: input, shape index: {}]
  %s2 = inlined_call_operand.hbm [shape: f32[16,128], index: 2, kind: output, shape index: {}]
  %s3 = sld [smem:[#allocation0]]
  $region22: #{tpu_custom_call.1} parent=0
    _
  %s5 = ssub.s32 1, %s3
  %s6 = scalar_select 0, %s5, %s3
  $region1: #{tpu_custom_call.1} parent=0
    #allocation2 [shape = 'u8[12288]{0}', space=vmem, size = 0x3000, scoped, tag = 'input window, operand 1, single buffered']
    #allocation3 [shape = 's32[1]{0}', space=sflag, size = 0x4, scoped, tag = 'scoped memory for tpu_custom_call.1']
    #allocation4 [shape = 's32[1]{0}', space=sflag, size = 0x4, scoped, tag = 'scoped memory for tpu_custom_call.1']
    #allocation5 [shape = 'u8[8192]{0}', space=vmem, size = 0x2000, scoped, tag = 'output window, operand 0, single buffered']
    %7 = vsyncpa [#allocation3], 0
    %8 = vsyncpa [#allocation4], 0
    // Predicated region
    $region2: #{tpu_custom_call.1} parent=1 // pred_check
      _
    $region3: #{tpu_custom_call.1} parent=1 // pred_check_branch
      %10 = sbr.rel (0) target = $region5
    $region4: #{tpu_custom_call.1} parent=1 // pred_region
      _
    $region5: #{tpu_custom_call.1} parent=1 // pred_fallthru
      _
    // Predicated region
    $region6: #{tpu_custom_call.1} parent=1 // pred_check
      _
    $region7: #{tpu_custom_call.1} parent=1 // pred_check_branch
      %12 = sbr.rel (0) target = $region9
    $region8: #{tpu_custom_call.1} parent=1 // pred_region
      %14 = vsyncadd [#allocation3], 0
      %s15 = sshll.u32 %s1, 4
      %s16 = int_to_ptr.hbm [resolvable:$true] %s15
      %s17 = sshll.u32 [#allocation2], 4
      %s18 = int_to_ptr.vmem [resolvable:$true] %s17
      %23 = dma.hbm_to_vmem [thread:$0]  %s16, 384, %s18, [#allocation3], 64, 64, 4
    $region9: #{tpu_custom_call.1} parent=1 // pred_fallthru
      _
    // Predicated region
    $region10: #{tpu_custom_call.1} parent=1 // pred_check
      _
    $region11: #{tpu_custom_call.1} parent=1 // pred_check_branch
      %25 = sbr.rel (0) target = $region13
    $region12: #{tpu_custom_call.1} parent=1 // pred_region
      %27 = dma.done [#allocation3], 384
    $region13: #{tpu_custom_call.1} parent=1 // pred_fallthru
      _
    %v29 = vld [vmem:[%s0] sm:$0xff]
    %v30 = vld [vmem:[%s0 + $0x8] sm:$0xff]
    %v31 = vlaneseq
    %v32 = vand.u32 %v31, 127
    %33 = vset.pattern.permute.xlu0 0
    %34 = vperm.xlu0 %33, %v29
    %v35 = vpop.permute.xlu0 %34
    %36 = vset.pattern.permute.xlu0 0
    %37 = vperm.xlu0 %36, %v30
    %v38 = vpop.permute.xlu0 %37
    %vm39 = vcmp.eq.s32.totalorder %v32, %v35
    %vm40 = vcmp.eq.s32.totalorder %v32, %v38
    %v41 = vsel %vm39, 1.0, 0.0
    %v42 = vsel %vm40, 1.0, 0.0
    %v43 = vpack.c.bf16 %v42, %v41
    %v44 = vld [vmem:[#allocation2] sm:$0xf]
    %v45 = vld [vmem:[#allocation2 + $0x4] sm:$0xf]
    %s46 = scalar_lea.vmem [#allocation2], 8
    %v47 = vld [vmem:[%s46] sm:$0xf]
    %v48 = vld [vmem:[%s46 + $0x4] sm:$0xf]
    %v51 = vunpack.c.l.b16 %v47
    %v52 = vunpack.c.l.b16 %v48
    %v53 = vpack.c.b16 %v52, %v51
    %vm55 = vcmask 130048
    %v57 = vsel %vm55, %v43, 0
    %59 = vmatpush.bf16.msra.mxu0 0
    %60 = vmatpush.bf16.msra.mxu0 0
    %61 = vmatpush.bf16.msra.mxu0 0
    %62 = vmatpush.bf16.msra.mxu0 0
    %63 = vmatpush.bf16.msra.mxu0 0
    %64 = vmatpush.bf16.msra.mxu0 0
    %65 = vmatpush.bf16.msra.mxu0 0
    %66 = vmatpush.bf16.msra.mxu0 %v53
    %67 = vmatmul.bf16.gmra.mxu0 %v57
    %v68 = vpop.f32.mrf.mxu0
    %v69 = vadd.f32 0.0, %v68
    %v70 = vpop.f32.mrf.mxu0
    %v71 = vadd.f32 0.0, %v70
    %72 = vdwg.mxu0
    %v75 = vunpack.c.l.b16 %v44
    %v76 = vunpack.c.l.b16 %v45
    %v77 = vpack.c.b16 %v76, %v75
    %79 = vmatpush.bf16.msra.mxu0 0
    %80 = vmatpush.bf16.msra.mxu0 0
    %81 = vmatpush.bf16.msra.mxu0 0
    %82 = vmatpush.bf16.msra.mxu0 0
    %83 = vmatpush.bf16.msra.mxu0 0
    %84 = vmatpush.bf16.msra.mxu0 0
    %85 = vmatpush.bf16.msra.mxu0 0
    %86 = vmatpush.bf16.msra.mxu0 %v77
    %87 = vmatmul.bf16.gmra.mxu0 %v57
    %v88 = vpop.f32.mrf.mxu0
    %v89 = vadd.f32 %v69, %v88
    %v90 = vpop.f32.mrf.mxu0
    %v91 = vadd.f32 %v71, %v90
    %92 = vdwg.mxu0
    %s93 = scalar_lea.vmem [#allocation2], 16
    %v94 = vld [vmem:[%s93] sm:$0xf]
    %v95 = vld [vmem:[%s93 + $0x4] sm:$0xf]
    %v98 = vunpack.c.l.b16 %v94
    %v99 = vunpack.c.l.b16 %v95
    %v100 = vpack.c.b16 %v99, %v98
    %102 = vmatpush.bf16.msra.mxu0 0
    %103 = vmatpush.bf16.msra.mxu0 0
    %104 = vmatpush.bf16.msra.mxu0 0
    %105 = vmatpush.bf16.msra.mxu0 0
    %106 = vmatpush.bf16.msra.mxu0 0
    %107 = vmatpush.bf16.msra.mxu0 0
    %108 = vmatpush.bf16.msra.mxu0 0
    %109 = vmatpush.bf16.msra.mxu0 %v100
    %110 = vmatmul.bf16.gmra.mxu0 %v57
    %v111 = vpop.f32.mrf.mxu0
    %v112 = vadd.f32 0.0, %v111
    %v113 = vpop.f32.mrf.mxu0
    %v114 = vadd.f32 0.0, %v113
    %115 = vdwg.mxu0
    %v116 = vadd.f32 %v89, %v112
    %v117 = vadd.f32 %v91, %v114
    %118 = vst [vmem:[#allocation5] sm:$0xff] %v116
    %119 = vst [vmem:[#allocation5 + $0x8] sm:$0xff] %v117
    // Predicated region
    $region14: #{tpu_custom_call.1} parent=1 // pred_check
      _
    $region15: #{tpu_custom_call.1} parent=1 // pred_check_branch
      %121 = sbr.rel (0) target = $region17
    $region16: #{tpu_custom_call.1} parent=1 // pred_region
      %123 = vsyncadd [#allocation4], 0
      %s124 = sshll.u32 [#allocation5], 4
      %s125 = int_to_ptr.vmem [resolvable:$true] %s124
      %s126 = sshll.u32 %s2, 4
      %s127 = int_to_ptr.hbm [resolvable:$true] %s126
      %132 = dma.vmem_to_hbm [thread:$0]  %s125, 256, %s127, [#allocation4], 128, 128, 8
    $region17: #{tpu_custom_call.1} parent=1 // pred_fallthru
      _
    // Predicated region
    $region18: #{tpu_custom_call.1} parent=1 // pred_check
      _
    $region19: #{tpu_custom_call.1} parent=1 // pred_check_branch
      %134 = sbr.rel (0) target = $region21
    $region20: #{tpu_custom_call.1} parent=1 // pred_region
      %136 = dma.done [#allocation4], 256
    $region21: #{tpu_custom_call.1} parent=1 // pred_fallthru
      _
    %137 = vsyncpa [#allocation3], 1
    %138 = vsyncpa [#allocation4], 1

</llo_original>
